<compile_context>
chip_gen: v7x
topology: tpu7x:2x2x1
jax: 0.10.0
libtpu: 0.0.40
codegen_flags: <defaults>
</compile_context>

<pallas_src>
import functools

import jax
import jax.numpy as jnp
from jax.experimental import pallas as pl
from jax.experimental.pallas import tpu as pltpu


def _conv_bn_relu_kernel(x_ref, w_ref, shift_ref, out_ref, *, k, tile_h, stride):
    # x_ref:     (Hp, Wp*Cin)         padded input rows for this batch (resident)
    # w_ref:     (K, Wp*Cin, Wo*Cout) width-Toeplitz weights, BN scale folded in
    # shift_ref: (1, Wo*Cout)         folded conv-bias + BN shift, tiled over Wo
    # out_ref:   (tile_h, Wo*Cout)    lane-dense output rows
    r = pl.program_id(1)
    row0 = r * tile_h * stride
    acc = jnp.zeros(out_ref.shape, jnp.float32)
    for kh in range(k):                                   # static unroll over kernel rows
        if stride == 1:
            rows = x_ref[pl.ds(row0 + kh, tile_h), :]
        else:
            rows = x_ref[pl.ds(row0 + kh, tile_h, stride=stride), :]
        acc = acc + jnp.dot(rows, w_ref[kh], preferred_element_type=jnp.float32)
    out_ref[...] = jnp.maximum(acc + shift_ref[...], 0.0).astype(out_ref.dtype)


@functools.partial(jax.jit, static_argnames=("kernel_size", "stride", "padding"))
def conv2d_block_forward(x, weight, conv_bias, bn_gamma, bn_beta,
                         bn_mean, bn_var, *, kernel_size, stride, padding,
                         eps=1e-5):
    """Forward of Conv2DBlock: Conv2d -> BatchNorm2d(eval) -> ReLU. x is NCHW."""
    n, c_in, h, w = x.shape
    c_out = weight.shape[0]
    k, s, p = kernel_size, stride, padding
    ho = (h + 2 * p - k) // s + 1
    wo = (w + 2 * p - k) // s + 1
    hp, wp = h + 2 * p, w + 2 * p

    # NCHW -> padded NHWC, lanes = Wp*Cin (single layout pass, no 9x im2col).
    x_nhwc = jnp.transpose(x, (0, 2, 3, 1))
    x_pad = jnp.pad(x_nhwc, ((0, 0), (p, p), (p, p), (0, 0)))
    x_flat = x_pad.reshape(n, hp, wp * c_in)

    # Fold eval-mode BN into per-channel scale/shift; fold scale into weights.
    inv_std = 1.0 / jnp.sqrt(bn_var + eps)
    scale = bn_gamma * inv_std                                   # (Cout,)
    shift = (conv_bias - bn_mean) * scale + bn_beta              # (Cout,)

    # Width-Toeplitz weight:
    #   w_big[kh, wp*Cin + ci, wo*Cout + co]
    #       = scale[co] * W[kh, wp - wo*s, ci, co]   if 0 <= wp - wo*s < K else 0
    w_hwio = jnp.transpose(weight, (2, 3, 1, 0)) * scale         # (K, K, Cin, Cout)
    kw_idx = jnp.arange(wp)[:, None] - jnp.arange(wo)[None, :] * s   # (Wp, Wo)
    valid = (kw_idx >= 0) & (kw_idx < k)
    w_g = w_hwio[:, jnp.clip(kw_idx, 0, k - 1), :, :]            # (K, Wp, Wo, Cin, Cout)
    w_g = jnp.where(valid[None, :, :, None, None], w_g, 0.0)
    w_big = jnp.transpose(w_g, (0, 1, 3, 2, 4)).reshape(k, wp * c_in, wo * c_out)

    shift_wide = jnp.tile(shift, wo).reshape(1, wo * c_out)

    # Output-row tile: largest "nice" divisor of Ho. Grid stays (N, Ho/tile_h),
    # so on v7x the parallel batch axis keeps both TensorCores busy.
    tile_h = ho
    for cand in (512, 256, 128, 64, 32, 16, 8):
        if ho >= cand and ho % cand == 0:
            tile_h = cand
            break

    kernel = functools.partial(_conv_bn_relu_kernel, k=k, tile_h=tile_h, stride=s)

    out = pl.pallas_call(
        kernel,
        out_shape=jax.ShapeDtypeStruct((n, ho, wo * c_out), x.dtype),
        grid_spec=pltpu.PrefetchScalarGridSpec(
            num_scalar_prefetch=0,
            grid=(n, ho // tile_h),
            in_specs=[
                # Full padded image for this batch, resident across row tiles.
                pl.BlockSpec((None, hp, wp * c_in), lambda b, r: (b, 0, 0)),
                # Grid-invariant Toeplitz weights (stay resident in VMEM).
                pl.BlockSpec((k, wp * c_in, wo * c_out), lambda b, r: (0, 0, 0)),
                pl.BlockSpec((1, wo * c_out), lambda b, r: (0, 0)),
            ],
            out_specs=pl.BlockSpec((None, tile_h, wo * c_out),
                                   lambda b, r: (b, r, 0)),
        ),
        compiler_params=pltpu.CompilerParams(
            dimension_semantics=("parallel", "parallel")),
    )(x_flat, w_big, shift_wide)

    out = out.reshape(n, ho, wo, c_out)
    return jnp.transpose(out, (0, 3, 1, 2))                      # back to NCHW


def _reference(x, weight, conv_bias, bn_gamma, bn_beta, bn_mean, bn_var,
               kernel_size, stride, padding, eps=1e-5):
    """Plain-JAX reference (lax conv) for a correctness sanity check."""
    y = jax.lax.conv_general_dilated(
        x, weight, window_strides=(stride, stride),
        padding=[(padding, padding), (padding, padding)],
        dimension_numbers=("NCHW", "OIHW", "NCHW"))
    y = y + conv_bias[None, :, None, None]
    y = (y - bn_mean[None, :, None, None]) / jnp.sqrt(bn_var + eps)[None, :, None, None]
    y = y * bn_gamma[None, :, None, None] + bn_beta[None, :, None, None]
    return jnp.maximum(y, 0.0)


if __name__ == "__main__":
    # Shapes implied by the module: Conv2DBlock(4, 8, kernel_size=3, stride=1,
    # padding=1) on an NCHW input (2, 4, 16, 16).  Wo*Cout = 128 -> lane-dense.
    N, C_IN, H, W = 2, 4, 16, 16
    C_OUT, K, STRIDE, PAD = 8, 3, 1, 1

    key = jax.random.PRNGKey(0)
    kx, kwt, kb, kg, kbe = jax.random.split(key, 5)

    x = jax.random.normal(kx, (N, C_IN, H, W), dtype=jnp.float32)
    weight = jax.random.normal(kwt, (C_OUT, C_IN, K, K), dtype=jnp.float32) * 0.1
    conv_bias = jax.random.normal(kb, (C_OUT,), dtype=jnp.float32) * 0.1
    bn_gamma = 1.0 + 0.1 * jax.random.normal(kg, (C_OUT,), dtype=jnp.float32)
    bn_beta = 0.1 * jax.random.normal(kbe, (C_OUT,), dtype=jnp.float32)
    bn_mean = jnp.zeros((C_OUT,), dtype=jnp.float32)   # running stats at init
    bn_var = jnp.ones((C_OUT,), dtype=jnp.float32)

    out = conv2d_block_forward(x, weight, conv_bias, bn_gamma, bn_beta,
                               bn_mean, bn_var,
                               kernel_size=K, stride=STRIDE, padding=PAD)
    out = jax.block_until_ready(out)

    ref = _reference(x, weight, conv_bias, bn_gamma, bn_beta, bn_mean, bn_var,
                     K, STRIDE, PAD)
    assert out.shape == (N, C_OUT, H, W), out.shape
    assert jnp.allclose(out, ref, atol=1e-4, rtol=1e-4), "mismatch vs reference"

    print("KERNEL_OK")
</pallas_src>

<mosaic_0001>
module attributes {stable_mosaic.version = 11 : i64} {
  func.func @_conv_bn_relu_kernel(%arg0: i32, %arg1: i32, %arg2: memref<1x18x72xf32, #tpu.memory_space<vmem>>, %arg3: memref<3x72x128xf32, #tpu.memory_space<vmem>>, %arg4: memref<1x128xf32, #tpu.memory_space<vmem>>, %arg5: memref<1x16x128xf32, #tpu.memory_space<vmem>>) attributes {dimension_semantics = [#tpu.dimension_semantics<parallel>, #tpu.dimension_semantics<parallel>], iteration_bounds = array<i64: 2, 1>, scalar_prefetch = 0 : i64, scratch_operands = 0 : i64, tpu.core_type = #tpu.core_type<tc>, window_params = [{transform_indices = @transform_0, window_bounds = array<i64: 1, 18, 72>}, {pipeline_mode = #tpu.pipeline_mode<synchronous>, transform_indices = @transform_1, window_bounds = array<i64: 3, 72, 128>}, {pipeline_mode = #tpu.pipeline_mode<synchronous>, transform_indices = @transform_2, window_bounds = array<i64: 1, 128>}, {transform_indices = @transform_3, window_bounds = array<i64: 1, 16, 128>}]} {
    %c16_i32 = arith.constant 16 : i32
    %0 = arith.muli %arg1, %c16_i32 : i32
    %c1_i32 = arith.constant 1 : i32
    %1 = arith.muli %0, %c1_i32 : i32
    %cst = arith.constant 0.000000e+00 : f32
    %2 = vector.broadcast %cst : f32 to vector<16x128xf32>
    %c0_i32 = arith.constant 0 : i32
    %3 = arith.addi %1, %c0_i32 : i32
    %c0 = arith.constant 0 : index
    %4 = arith.index_cast %3 : i32 to index
    %c0_0 = arith.constant 0 : index
    %5 = vector.load %arg2[%c0, %4, %c0_0] : memref<1x18x72xf32, #tpu.memory_space<vmem>>, vector<1x16x72xf32>
    %6 = vector.shape_cast %5 : vector<1x16x72xf32> to vector<16x72xf32>
    %c0_1 = arith.constant 0 : index
    %c0_2 = arith.constant 0 : index
    %c0_3 = arith.constant 0 : index
    %7 = vector.load %arg3[%c0_1, %c0_2, %c0_3] : memref<3x72x128xf32, #tpu.memory_space<vmem>>, vector<1x72x128xf32>
    %8 = vector.shape_cast %7 : vector<1x72x128xf32> to vector<72x128xf32>
    %cst_4 = arith.constant dense<0.000000e+00> : vector<16x128xf32>
    %9 = tpu.matmul %6, %8, %cst_4 {dimension_numbers = #tpu.dot_dimension_numbers<[1], [0], [0], [1], [0, 0, 1, 1], [], []>} : vector<16x72xf32>, vector<72x128xf32>, vector<16x128xf32> -> vector<16x128xf32>
    %10 = arith.addf %2, %9 : vector<16x128xf32>
    %c1_i32_5 = arith.constant 1 : i32
    %11 = arith.addi %1, %c1_i32_5 : i32
    %c0_6 = arith.constant 0 : index
    %12 = arith.index_cast %11 : i32 to index
    %c0_7 = arith.constant 0 : index
    %13 = vector.load %arg2[%c0_6, %12, %c0_7] : memref<1x18x72xf32, #tpu.memory_space<vmem>>, vector<1x16x72xf32>
    %14 = vector.shape_cast %13 : vector<1x16x72xf32> to vector<16x72xf32>
    %c1 = arith.constant 1 : index
    %c0_8 = arith.constant 0 : index
    %c0_9 = arith.constant 0 : index
    %15 = vector.load %arg3[%c1, %c0_8, %c0_9] : memref<3x72x128xf32, #tpu.memory_space<vmem>>, vector<1x72x128xf32>
    %16 = vector.shape_cast %15 : vector<1x72x128xf32> to vector<72x128xf32>
    %cst_10 = arith.constant dense<0.000000e+00> : vector<16x128xf32>
    %17 = tpu.matmul %14, %16, %cst_10 {dimension_numbers = #tpu.dot_dimension_numbers<[1], [0], [0], [1], [0, 0, 1, 1], [], []>} : vector<16x72xf32>, vector<72x128xf32>, vector<16x128xf32> -> vector<16x128xf32>
    %18 = arith.addf %10, %17 : vector<16x128xf32>
    %c2_i32 = arith.constant 2 : i32
    %19 = arith.addi %1, %c2_i32 : i32
    %c0_11 = arith.constant 0 : index
    %20 = arith.index_cast %19 : i32 to index
    %c0_12 = arith.constant 0 : index
    %21 = vector.load %arg2[%c0_11, %20, %c0_12] : memref<1x18x72xf32, #tpu.memory_space<vmem>>, vector<1x16x72xf32>
    %22 = vector.shape_cast %21 : vector<1x16x72xf32> to vector<16x72xf32>
    %c2 = arith.constant 2 : index
    %c0_13 = arith.constant 0 : index
    %c0_14 = arith.constant 0 : index
    %23 = vector.load %arg3[%c2, %c0_13, %c0_14] : memref<3x72x128xf32, #tpu.memory_space<vmem>>, vector<1x72x128xf32>
    %24 = vector.shape_cast %23 : vector<1x72x128xf32> to vector<72x128xf32>
    %cst_15 = arith.constant dense<0.000000e+00> : vector<16x128xf32>
    %25 = tpu.matmul %22, %24, %cst_15 {dimension_numbers = #tpu.dot_dimension_numbers<[1], [0], [0], [1], [0, 0, 1, 1], [], []>} : vector<16x72xf32>, vector<72x128xf32>, vector<16x128xf32> -> vector<16x128xf32>
    %26 = arith.addf %18, %25 : vector<16x128xf32>
    %c0_16 = arith.constant 0 : index
    %c0_17 = arith.constant 0 : index
    %27 = vector.load %arg4[%c0_16, %c0_17] : memref<1x128xf32, #tpu.memory_space<vmem>>, vector<1x128xf32>
    %28 = vector.broadcast %27 : vector<1x128xf32> to vector<16x128xf32>
    %29 = arith.addf %26, %28 : vector<16x128xf32>
    %cst_18 = arith.constant 0.000000e+00 : f32
    %30 = vector.broadcast %cst_18 : f32 to vector<16x128xf32>
    %31 = arith.maximumf %29, %30 : vector<16x128xf32>
    %c0_19 = arith.constant 0 : index
    %c0_20 = arith.constant 0 : index
    %c0_21 = arith.constant 0 : index
    %32 = vector.load %arg5[%c0_19, %c0_20, %c0_21] : memref<1x16x128xf32, #tpu.memory_space<vmem>>, vector<1x16x128xf32>
    %33 = vector.shape_cast %32 : vector<1x16x128xf32> to vector<16x128xf32>
    %34 = vector.shape_cast %31 : vector<16x128xf32> to vector<1x16x128xf32>
    tpu.vector_store %arg5[%c0_19, %c0_20, %c0_21], %34 {strides = array<i32>} : memref<1x16x128xf32, #tpu.memory_space<vmem>>, vector<1x16x128xf32>,
    return
  }
  func.func @transform_0(%arg0: i32, %arg1: i32) -> (i32, i32, i32) {
    %c0_i32 = arith.constant 0 : i32
    %c0_i32_0 = arith.constant 0 : i32
    %c0_i32_1 = arith.constant 0 : i32
    return %arg0, %c0_i32, %c0_i32_0 : i32, i32, i32
  }
  func.func @transform_1(%arg0: i32, %arg1: i32) -> (i32, i32, i32) {
    %c0_i32 = arith.constant 0 : i32
    %c0_i32_0 = arith.constant 0 : i32
    %c0_i32_1 = arith.constant 0 : i32
    %c0_i32_2 = arith.constant 0 : i32
    return %c0_i32, %c0_i32_0, %c0_i32_1 : i32, i32, i32
  }
  func.func @transform_2(%arg0: i32, %arg1: i32) -> (i32, i32) {
    %c0_i32 = arith.constant 0 : i32
    %c0_i32_0 = arith.constant 0 : i32
    %c0_i32_1 = arith.constant 0 : i32
    return %c0_i32, %c0_i32_0 : i32, i32
  }
  func.func @transform_3(%arg0: i32, %arg1: i32) -> (i32, i32, i32) {
    %c0_i32 = arith.constant 0 : i32
    %c0_i32_0 = arith.constant 0 : i32
    return %arg0, %arg1, %c0_i32 : i32, i32, i32
  }
}

</mosaic_0001>

<llo_original>
// kernel: tile.8
$region0: #{tile.8}
  #allocation0 [shape = 's32[1]{0}', space=sflag, size = 0x4, scoped, tag = 'scoped memory for tile.8']
  %s0 = inlined_call_operand.vmem [shape: f32[8], index: 0, kind: input, shape index: {}]
  %s1 = inlined_call_operand.vmem [shape: f32[16,8], index: 1, kind: output, shape index: {}]
  // Predicated region
  $region2: #{tile.8} parent=0 // pred_check
    _
  $region3: #{tile.8} parent=0 // pred_check_branch
    %3 = sbr.rel (0) target = $region5
  $region4: #{tile.8} parent=0 // pred_region
    _
  $region5: #{tile.8} parent=0 // pred_fallthru
    _
  %v4 = vld [vmem:[%s0] ss:$0 sm:$0xff]
  %5 = vst [vmem:[%s1] sm:$0xff] %v4
  %s6 = scalar_lea.vmem %s1, 8
  %7 = vst [vmem:[%s6] sm:$0xff] %v4

// kernel: tile.9
$region0: #{tile.9}
  %s0 = inlined_call_operand.vmem [shape: f32[16,8], index: 0, kind: input, shape index: {}]
  %s1 = inlined_call_operand.vmem [shape: f32[1,128], index: 1, kind: output, shape index: {}]
  $region1: #{tile.9} parent=0
    #allocation0 [shape = 'u8[4096]{0}', space=vmem, size = 0x1000, scoped, tag = 'scoped mem for output reshape']
    %v2 = vld [vmem:[%s0] sm:$0x1]
    %vm3 = vcmask 64512
    %4 = vst.msk [vmem:[#allocation0] sm:$0x1] %vm3, %v2
    %s5 = scalar_lea.vmem %s0, 15
    %v6 = vld [vmem:[%s5] sm:$0x1]
    %7 = vrot.lane.b32.xlu0 %v6, 120
    %v8 = vpop.permute.xlu0 %7
    %vm9 = vcmask 1048512
    %10 = vst.msk [vmem:[#allocation0] sm:$0x1] %vm9, %v8
    %s11 = scalar_lea.vmem %s0, 14
    %v12 = vld [vmem:[%s11] sm:$0x1]
    %13 = vrot.lane.b32.xlu0 %v12, 112
    %v14 = vpop.permute.xlu0 %13
    %vm15 = vcmask 982912
    %16 = vst.msk [vmem:[#allocation0] sm:$0x1] %vm15, %v14
    %s17 = scalar_lea.vmem %s0, 13
    %v18 = vld [vmem:[%s17] sm:$0x1]
    %19 = vrot.lane.b32.xlu0 %v18, 104
    %v20 = vpop.permute.xlu0 %19
    %vm21 = vcmask 917312
    %22 = vst.msk [vmem:[#allocation0] sm:$0x1] %vm21, %v20
    %s23 = scalar_lea.vmem %s0, 12
    %v24 = vld [vmem:[%s23] sm:$0x1]
    %25 = vrot.lane.b32.xlu0 %v24, 96
    %v26 = vpop.permute.xlu0 %25
    %vm27 = vcmask 851712
    %28 = vst.msk [vmem:[#allocation0] sm:$0x1] %vm27, %v26
    %s29 = scalar_lea.vmem %s0, 11
    %v30 = vld [vmem:[%s29] sm:$0x1]
    %31 = vrot.lane.b32.xlu0 %v30, 88
    %v32 = vpop.permute.xlu0 %31
    %vm33 = vcmask 786112
    %34 = vst.msk [vmem:[#allocation0] sm:$0x1] %vm33, %v32
    %s35 = scalar_lea.vmem %s0, 10
    %v36 = vld [vmem:[%s35] sm:$0x1]
    %37 = vrot.lane.b32.xlu0 %v36, 80
    %v38 = vpop.permute.xlu0 %37
    %vm39 = vcmask 720512
    %40 = vst.msk [vmem:[#allocation0] sm:$0x1] %vm39, %v38
    %s41 = scalar_lea.vmem %s0, 9
    %v42 = vld [vmem:[%s41] sm:$0x1]
    %43 = vrot.lane.b32.xlu0 %v42, 72
    %v44 = vpop.permute.xlu0 %43
    %vm45 = vcmask 654912
    %46 = vst.msk [vmem:[#allocation0] sm:$0x1] %vm45, %v44
    %s47 = scalar_lea.vmem %s0, 8
    %v48 = vld [vmem:[%s47] sm:$0x1]
    %49 = vrot.lane.b32.xlu0 %v48, 64
    %v50 = vpop.permute.xlu0 %49
    %vm51 = vcmask 589312
    %52 = vst.msk [vmem:[#allocation0] sm:$0x1] %vm51, %v50
    %s53 = scalar_lea.vmem %s0, 7
    %v54 = vld [vmem:[%s53] sm:$0x1]
    %55 = vrot.lane.b32.xlu0 %v54, 56
    %v56 = vpop.permute.xlu0 %55
    %vm57 = vcmask 523712
    %58 = vst.msk [vmem:[#allocation0] sm:$0x1] %vm57, %v56
    %s59 = scalar_lea.vmem %s0, 6
    %v60 = vld [vmem:[%s59] sm:$0x1]
    %61 = vrot.lane.b32.xlu0 %v60, 48
    %v62 = vpop.permute.xlu0 %61
    %vm63 = vcmask 458112
    %64 = vst.msk [vmem:[#allocation0] sm:$0x1] %vm63, %v62
    %s65 = scalar_lea.vmem %s0, 5
    %v66 = vld [vmem:[%s65] sm:$0x1]
    %67 = vrot.lane.b32.xlu0 %v66, 40
    %v68 = vpop.permute.xlu0 %67
    %vm69 = vcmask 392512
    %70 = vst.msk [vmem:[#allocation0] sm:$0x1] %vm69, %v68
    %s71 = scalar_lea.vmem %s0, 4
    %v72 = vld [vmem:[%s71] sm:$0x1]
    %73 = vrot.lane.b32.xlu0 %v72, 32
    %v74 = vpop.permute.xlu0 %73
    %vm75 = vcmask 326912
    %76 = vst.msk [vmem:[#allocation0] sm:$0x1] %vm75, %v74
    %s77 = scalar_lea.vmem %s0, 3
    %v78 = vld [vmem:[%s77] sm:$0x1]
    %79 = vrot.lane.b32.xlu0 %v78, 24
    %v80 = vpop.permute.xlu0 %79
    %vm81 = vcmask 261312
    %82 = vst.msk [vmem:[#allocation0] sm:$0x1] %vm81, %v80
    %s83 = scalar_lea.vmem %s0, 2
    %v84 = vld [vmem:[%s83] sm:$0x1]
    %85 = vrot.lane.b32.xlu0 %v84, 16
    %v86 = vpop.permute.xlu0 %85
    %vm87 = vcmask 195712
    %88 = vst.msk [vmem:[#allocation0] sm:$0x1] %vm87, %v86
    %s89 = scalar_lea.vmem %s0, 1
    %v90 = vld [vmem:[%s89] sm:$0x1]
    %91 = vrot.lane.b32.xlu0 %v90, 8
    %v92 = vpop.permute.xlu0 %91
    %vm93 = vcmask 130112
    %94 = vst.msk [vmem:[#allocation0] sm:$0x1] %vm93, %v92
    %s96 = sshllo.u32 0, 1
    %v98 = vld [vmem:[#allocation0] sm:%s96]
    %s99 = sshllo.u32 0, 1
    %100 = vst [vmem:[%s1] sm:%s99] %v98

// kernel: conv2d_block_forward.1
$region0: #{conv2d_block_forward.1}
  #allocation0 [shape = 'u32[]', space=smem, size = 0x4, offset = 0x4, fixed_abs, tag = 'smem constant byte address 0x4 - core index']
  #allocation1 [shape = 'u32[144,128]{1,0:T(1,128)}', space=vmem, size = 0x12000, scoped, tag = 'internal scratch']
  %s0 = inlined_call_operand.vmem [shape: f32[2,18,72], index: 0, kind: input, shape index: {}]
  %s1 = inlined_call_operand.vmem [shape: f32[3,72,128], index: 1, kind: input, shape index: {}]
  %s2 = inlined_call_operand.vmem [shape: f32[1,128], index: 2, kind: input, shape index: {}]
  %s3 = inlined_call_operand.vmem [shape: f32[2,16,128], index: 3, kind: output, shape index: {}]
  %s4 = sld [smem:[#allocation0]]
  $region45: #{conv2d_block_forward.1} parent=0
    _
  %s6 = ssub.s32 1, %s4
  %s7 = scalar_select 0, %s6, %s4
  loop: start=0, step=1, limit=4
  $region2: #{conv2d_block_forward.1} parent=0 // loop_pre_header
    _
  $region3: #{conv2d_block_forward.1} parent=0 // loop_header
    %s9 = sphi 0, %s13
    %p10 = scmp.ge.s32.totalorder %s9, 4
    %s16 = sphi 0, %s28
    %s17 = sphi 0, %s24
    %s18 = sphi 0, %s16
    %s19 = sphi 0, %s17
    %s20 = sphi 0, %s18
    %s21 = sphi 0, %s19
    %s31 = sphi 0, %s33
    %s34 = sphi 0, %s31
    %s35 = sphi 0, %s34
    %s51 = sphi 0, %s35
    %s55 = sphi 0, %s55
    %s57 = sphi 0, %s55
    %s58 = sphi 0, %s57
    %s72 = sphi 0, %s58
    %s76 = sphi 0, %s76
    %s78 = sphi 0, %s76
    %s79 = sphi 0, %s78
    %s93 = sphi 0, %s79
    %s101 = sphi 0, %s103
    %s104 = sphi 0, %s101
    %s105 = sphi 0, %s104
    %s121 = sphi 0, %s105
  $region4: #{conv2d_block_forward.1} parent=0 // loop_header_branch
    %12 = sbr.rel (%p10) target = $region8
  $region5: #{conv2d_block_forward.1} parent=0 // loop_body
    %s14 = ssub.s32 %s9, 1
    %s15 = ssub.s32 %s9, 2
    %s22 = sadd.s32 1, %s17
    %p23 = scmp.ge.s32.totalorder %s22, 1
    %s24 = scalar_select %p23, 0, %s22
    %s25 = sadd.s32 1, %s16
    %s26 = scalar_select %p23, %s25, %s16
    %p27 = scmp.ge.s32.totalorder %s26, 2
    %s28 = scalar_select %p27, 0, %s26
    %s29 = ssub.s32 %s16, %s28
    %p30 = scmp.eq.s32.totalorder %s29, 0
    %s32 = sadd.s32 %s31, 1
    %s33 = scalar_select %p30, %s31, %s32
    %p36 = pneg %p30
    %p37 = scmp.eq.s32.totalorder %s9, 1
    %p38 = por %p36, %p37
    %p39 = scmp.ne.s32.totalorder %s31, %s34
    %p40 = scmp.eq.s32.totalorder %s9, 0
    %p41 = por %p39, %p40
    %p42 = scmp.ne.s32.totalorder %s31, %s34
    %p43 = scmp.eq.s32.totalorder %s14, 1
    %p44 = por %p42, %p43
    %p45 = scmp.ne.s32.totalorder %s34, %s35
    %p46 = scmp.eq.s32.totalorder %s14, 0
    %p47 = por %p45, %p46
    %p48 = scmp.ne.s32.totalorder %s34, %s35
    %p49 = scmp.eq.s32.totalorder %s15, 1
    %p50 = por %p48, %p49
    %p52 = scmp.ne.s32.totalorder %s35, %s51
    %p53 = scmp.eq.s32.totalorder %s15, 0
    %p54 = por %p52, %p53
    %s56 = sadd.s32 %s55, 1
    %p59 = scmp.eq.s32.totalorder %s9, 1
    %p60 = scmp.ne.s32.totalorder %s55, %s57
    %p61 = scmp.eq.s32.totalorder %s9, 0
    %p62 = por %p60, %p61
    %p63 = scmp.ne.s32.totalorder %s55, %s57
    %p64 = scmp.eq.s32.totalorder %s14, 1
    %p65 = por %p63, %p64
    %p66 = scmp.ne.s32.totalorder %s57, %s58
    %p67 = scmp.eq.s32.totalorder %s14, 0
    %p68 = por %p66, %p67
    %p69 = scmp.ne.s32.totalorder %s57, %s58
    %p70 = scmp.eq.s32.totalorder %s15, 1
    %p71 = por %p69, %p70
    %p73 = scmp.ne.s32.totalorder %s58, %s72
    %p74 = scmp.eq.s32.totalorder %s15, 0
    %p75 = por %p73, %p74
    %s77 = sadd.s32 %s76, 1
    %p80 = scmp.eq.s32.totalorder %s9, 1
    %p81 = scmp.ne.s32.totalorder %s76, %s78
    %p82 = scmp.eq.s32.totalorder %s9, 0
    %p83 = por %p81, %p82
    %p84 = scmp.ne.s32.totalorder %s76, %s78
    %p85 = scmp.eq.s32.totalorder %s14, 1
    %p86 = por %p84, %p85
    %p87 = scmp.ne.s32.totalorder %s78, %s79
    %p88 = scmp.eq.s32.totalorder %s14, 0
    %p89 = por %p87, %p88
    %p90 = scmp.ne.s32.totalorder %s78, %s79
    %p91 = scmp.eq.s32.totalorder %s15, 1
    %p92 = por %p90, %p91
    %p94 = scmp.ne.s32.totalorder %s79, %s93
    %p95 = scmp.eq.s32.totalorder %s15, 0
    %p96 = por %p94, %p95
    %s97 = ssub.s32 %s16, %s28
    %s98 = ssub.s32 %s17, %s24
    %s99 = sor.u32 %s97, %s98
    %p100 = scmp.eq.s32.totalorder %s99, 0
    %s102 = sadd.s32 %s101, 1
    %s103 = scalar_select %p100, %s101, %s102
    %p106 = pneg %p100
    %p107 = scmp.eq.s32.totalorder %s9, 1
    %p108 = por %p106, %p107
    %p109 = scmp.ne.s32.totalorder %s101, %s104
    %p110 = scmp.eq.s32.totalorder %s9, 0
    %p111 = por %p109, %p110
    %p112 = scmp.ne.s32.totalorder %s101, %s104
    %p113 = scmp.eq.s32.totalorder %s14, 1
    %p114 = por %p112, %p113
    %p115 = scmp.ne.s32.totalorder %s104, %s105
    %p116 = scmp.eq.s32.totalorder %s14, 0
    %p117 = por %p115, %p116
    %p118 = scmp.ne.s32.totalorder %s104, %s105
    %p119 = scmp.eq.s32.totalorder %s15, 1
    %p120 = por %p118, %p119
    %p122 = scmp.ne.s32.totalorder %s105, %s121
    %p123 = scmp.eq.s32.totalorder %s15, 0
    %p124 = por %p122, %p123
    %p125 = scmp.le.s32.totalorder 1, %s9
    %p126 = scmp.lt.s32.totalorder %s9, 3
    %p127 = pnand %p125, %p126
    %p128 = pneg %p127
    // Predicated region
    $region9: #{conv2d_block_forward.1} parent=5 // pred_check
      _
    $region10: #{conv2d_block_forward.1} parent=5 // pred_check_branch
      %130 = sbr.rel (%p127) target = $region12
    $region11: #{conv2d_block_forward.1} parent=5 // pred_region
      %s131 = ssub.s32 %s9, 1
      // Predicated region
      $region13: #{conv2d_block_forward.1} parent=11 // pred_check
        %p132 = pneg %p68
      $region14: #{conv2d_block_forward.1} parent=11 // pred_check_branch
        %134 = sbr.rel (%p132) target = $region16
      $region15: #{conv2d_block_forward.1} parent=11 // pred_region
        _
      $region16: #{conv2d_block_forward.1} parent=11 // pred_fallthru
        _
      // Predicated region
      $region17: #{conv2d_block_forward.1} parent=11 // pred_check
        %p135 = pneg %p89
      $region18: #{conv2d_block_forward.1} parent=11 // pred_check_branch
        %137 = sbr.rel (%p135) target = $region20
      $region19: #{conv2d_block_forward.1} parent=11 // pred_region
        _
      $region20: #{conv2d_block_forward.1} parent=11 // pred_fallthru
        _
    $region12: #{conv2d_block_forward.1} parent=5 // pred_fallthru
      _
    %p138 = scmp.lt.s32.totalorder %s9, 2
    // Predicated region
    $region21: #{conv2d_block_forward.1} parent=5 // pred_check
      %p139 = pneg %p138
    $region22: #{conv2d_block_forward.1} parent=5 // pred_check_branch
      %141 = sbr.rel (%p139) target = $region24
    $region23: #{conv2d_block_forward.1} parent=5 // pred_region
      // Predicated region
      $region25: #{conv2d_block_forward.1} parent=23 // pred_check
        %p142 = pneg %p41
      $region26: #{conv2d_block_forward.1} parent=23 // pred_check_branch
        %144 = sbr.rel (%p142) target = $region28
      $region27: #{conv2d_block_forward.1} parent=23 // pred_region
        %p145 = scmp.lt.s32.totalorder %s16, 1
        %s146 = scalar_select %p145, %s16, 1
        %s147 = smul.addr %s146, 3
        %s148 = smul.addr %s147, 8
        %s149 = scalar_lea.vmem %s0, %s148
      $region28: #{conv2d_block_forward.1} parent=23 // pred_fallthru
        _
    $region24: #{conv2d_block_forward.1} parent=5 // pred_fallthru
      _
    %p150 = scmp.le.s32.totalorder 1, %s9
    %p151 = scmp.lt.s32.totalorder %s9, 3
    %p152 = pnand %p150, %p151
    %p153 = pneg %p152
    // Predicated region
    $region29: #{conv2d_block_forward.1} parent=5 // pred_check
      _
    $region30: #{conv2d_block_forward.1} parent=5 // pred_check_branch
      %155 = sbr.rel (%p152) target = $region32
    $region31: #{conv2d_block_forward.1} parent=5 // pred_region
      %s156 = ssub.s32 %s9, 1
      %p157 = scmp.lt.s32.totalorder %s18, 1
      %s158 = scalar_select %p157, %s18, 1
      %s159 = smul.addr %s158, 3
      %s160 = smul.addr %s159, 8
      %s161 = scalar_lea.vmem %s0, %s160
      %p162 = pneg %p47
      %p163 = pneg %p44
      %p164 = pneg %p68
      %p165 = pneg %p65
      %p166 = pneg %p89
      %p167 = pneg %p86
      %p168 = pneg %p117
      %p169 = pneg %p114
      %s170 = smul.u32 2, %s19
      %p171 = scmp.lt.s32.totalorder %s18, 1
      %s172 = scalar_select %p171, %s18, 1
      %p173 = scmp.lt.s32.totalorder %s170, 1
      %s174 = scalar_select %p173, %s170, 1
      %s175 = smul.addr %s172, 2
      %s176 = sadd.s32 %s174, %s175
      %s177 = smul.addr %s176, 8
      %s178 = scalar_lea.vmem %s3, %s177
      %p179 = scmp.lt.s32.totalorder %s18, 1
      %s180 = scalar_select %p179, %s18, 1
      %s181 = smul.addr %s180, 3
      %s182 = smul.addr %s181, 8
      %s183 = scalar_lea.vmem %s0, %s182
      %s184 = smul.u32 2, %s19
      %p185 = scmp.lt.s32.totalorder %s18, 1
      %s186 = scalar_select %p185, %s18, 1
      %p187 = scmp.lt.s32.totalorder %s184, 1
      %s188 = scalar_select %p187, %s184, 1
      %s189 = smul.addr %s186, 2
      %s190 = sadd.s32 %s188, %s189
      %s191 = smul.addr %s190, 8
      %s192 = scalar_lea.vmem %s3, %s191
      %s193 = smul.u32 2, %s19
      %s194 = smul.u32 %s19, 16
      %s195 = scalar_lea.vmem %s183, %s194
      %v196 = vld [vmem:[%s195] sm:$0xff]
      %v197 = vld [vmem:[%s195 + $0x8] sm:$0xff]
      %v198 = vld [vmem:[%s1] sm:$0xff]
      %v199 = vld [vmem:[%s1 + $0x8] sm:$0xff]
      %v200 = vld [vmem:[%s1 + $0x10] sm:$0xff]
      %v201 = vld [vmem:[%s1 + $0x18] sm:$0xff]
      %v202 = vld [vmem:[%s1 + $0x20] sm:$0xff]
      %v203 = vld [vmem:[%s1 + $0x28] sm:$0xff]
      %v204 = vld [vmem:[%s1 + $0x30] sm:$0xff]
      %v205 = vld [vmem:[%s1 + $0x38] sm:$0xff]
      %v206 = vld [vmem:[%s1 + $0x40] sm:$0xff]
      %s207 = sadd.s32 %s194, 1
      %s208 = scalar_lea.vmem %s183, %s207
      %v209 = vld [vmem:[%s208] sm:$0xff]
      %v210 = vld [vmem:[%s208 + $0x8] sm:$0xff]
      %s211 = scalar_lea.vmem %s1, 72
      %v212 = vld [vmem:[%s211] sm:$0xff]
      %v213 = vld [vmem:[%s211 + $0x8] sm:$0xff]
      %v214 = vld [vmem:[%s211 + $0x10] sm:$0xff]
      %v215 = vld [vmem:[%s211 + $0x18] sm:$0xff]
      %v216 = vld [vmem:[%s211 + $0x20] sm:$0xff]
      %v217 = vld [vmem:[%s211 + $0x28] sm:$0xff]
      %v218 = vld [vmem:[%s211 + $0x30] sm:$0xff]
      %v219 = vld [vmem:[%s211 + $0x38] sm:$0xff]
      %v220 = vld [vmem:[%s211 + $0x40] sm:$0xff]
      %vm221 = vcmask 588800
      %v223 = vsel %vm221, %v209, 0
      %v226 = vsel %vm221, %v210, 0
      %228 = vmatprep.subr.mxu0 0.0
      %229 = vmatpush1.msra.mxu0 %v212
      %230 = vmatprep.subr.mxu0 0.0
      %231 = vmatpush1.msra.mxu0 %v213
      %232 = vmatprep.subr.mxu0 0.0
      %233 = vmatpush1.msra.mxu0 %v214
      %234 = vmatprep.subr.mxu0 0.0
      %235 = vmatpush1.msra.mxu0 %v215
      %236 = vmatprep.subr.mxu0 0.0
      %237 = vmatpush1.msra.mxu0 %v216
      %238 = vmatprep.subr.mxu0 0.0
      %239 = vmatpush1.msra.mxu0 %v217
      %240 = vmatprep.subr.mxu0 0.0
      %241 = vmatpush1.msra.mxu0 %v218
      %242 = vmatprep.subr.mxu0 0.0
      %243 = vmatpush1.msra.mxu0 %v219
      %244 = vmatprep.subr.mxu0 0.0
      %245 = vmatpush1.msra.mxu0 %v220
      %246 = vmatprep.subr.mxu0 0.0
      %247 = vmatpush1.msra.mxu0 0.0
      %248 = vmatprep.subr.mxu0 0.0
      %249 = vmatpush1.msra.mxu0 0.0
      %250 = vmatprep.subr.mxu0 0.0
      %251 = vmatpush1.msra.mxu0 0.0
      %252 = vmatprep.subr.mxu0 0.0
      %253 = vmatpush1.msra.mxu0 0.0
      %254 = vmatprep.subr.mxu0 0.0
      %255 = vmatpush1.msra.mxu0 0.0
      %256 = vmatprep.subr.mxu0 0.0
      %257 = vmatpush1.msra.mxu0 0.0
      %258 = vmatprep.subr.mxu0 0.0
      %259 = vmatpush1.msra.mxu0 0.0
      %260 = vmatprep.subr.mxu0 0.0
      %261 = vmatpush1.msra.mxu0 0.0
      %262 = vmatprep.subr.mxu0 0.0
      %263 = vmatpush1.msra.mxu0 0.0
      %264 = vmatprep.subr.mxu0 0.0
      %265 = vmatpush1.msra.mxu0 0.0
      %266 = vmatprep.subr.mxu0 0.0
      %267 = vmatpush1.msra.mxu0 0.0
      %268 = vmatprep.subr.mxu0 0.0
      %269 = vmatpush1.msra.mxu0 0.0
      %270 = vmatprep.subr.mxu0 0.0
      %271 = vmatpush1.msra.mxu0 0.0
      %272 = vmatprep.subr.mxu0 0.0
      %273 = vmatpush1.msra.mxu0 0.0
      %274 = vmatprep.subr.mxu0 0.0
      %275 = vmatpush1.msra.mxu0 0.0
      %276 = vmatprep.subr.mxu0 0.0
      %277 = vmatpush1.msra.mxu0 0.0
      %278 = vmatprep.subr.mxu0 0.0
      %279 = vmatpush1.msra.mxu0 0.0
      %280 = vmatprep.subr.mxu0 0.0
      %281 = vmatpush1.msra.mxu0 0.0
      %282 = vmatprep.subr.mxu0 0.0
      %283 = vmatpush1.msra.mxu0 0.0
      %284 = vmatprep.subr.mxu0 0.0
      %285 = vmatpush1.msra.mxu0 0.0
      %286 = vmatprep.subr.mxu0 0.0
      %287 = vmatpush1.msra.mxu0 0.0
      %288 = vmatprep.subr.mxu0 0.0
      %289 = vmatpush1.msra.mxu0 0.0
      %290 = vmatprep.subr.mxu0 0.0
      %291 = vmatpush1.msra.mxu0 0.0
      %292 = vmatprep.mubr.f32.mxu0 0.0
      %293 = vmatmul.mubr.f32.gmra.mrb[0].mxu0 %v223
      %v294 = vpop.f32.mrb[0].mxu0
      %v295 = vadd.f32 0.0, %v294
      %v296 = vpop.f32.mrb[0].mxu0
      %297 = vmatprep.mubr.f32.mxu0 0.0
      %298 = vmatmul.mubr.f32.gmra.mrb[0].mxu0 %v226
      %v299 = vpop.f32.mrb[0].mxu0
      %v300 = vadd.f32 0.0, %v299
      %v301 = vpop.f32.mrb[0].mxu0
      %302 = vdwg.mxu0
      %v304 = vsel %vm221, %v196, 0
      %v307 = vsel %vm221, %v197, 0
      %309 = vmatprep.subr.mxu0 0.0
      %310 = vmatpush1.msra.mxu0 %v198
      %311 = vmatprep.subr.mxu0 0.0
      %312 = vmatpush1.msra.mxu0 %v199
      %313 = vmatprep.subr.mxu0 0.0
      %314 = vmatpush1.msra.mxu0 %v200
      %315 = vmatprep.subr.mxu0 0.0
      %316 = vmatpush1.msra.mxu0 %v201
      %317 = vmatprep.subr.mxu0 0.0
      %318 = vmatpush1.msra.mxu0 %v202
      %319 = vmatprep.subr.mxu0 0.0
      %320 = vmatpush1.msra.mxu0 %v203
      %321 = vmatprep.subr.mxu0 0.0
      %322 = vmatpush1.msra.mxu0 %v204
      %323 = vmatprep.subr.mxu0 0.0
      %324 = vmatpush1.msra.mxu0 %v205
      %325 = vmatprep.subr.mxu0 0.0
      %326 = vmatpush1.msra.mxu0 %v206
      %327 = vmatprep.subr.mxu0 0.0
      %328 = vmatpush1.msra.mxu0 0.0
      %329 = vmatprep.subr.mxu0 0.0
      %330 = vmatpush1.msra.mxu0 0.0
      %331 = vmatprep.subr.mxu0 0.0
      %332 = vmatpush1.msra.mxu0 0.0
      %333 = vmatprep.subr.mxu0 0.0
      %334 = vmatpush1.msra.mxu0 0.0
      %335 = vmatprep.subr.mxu0 0.0
      %336 = vmatpush1.msra.mxu0 0.0
      %337 = vmatprep.subr.mxu0 0.0
      %338 = vmatpush1.msra.mxu0 0.0
      %339 = vmatprep.subr.mxu0 0.0
      %340 = vmatpush1.msra.mxu0 0.0
      %341 = vmatprep.subr.mxu0 0.0
      %342 = vmatpush1.msra.mxu0 0.0
      %343 = vmatprep.subr.mxu0 0.0
      %344 = vmatpush1.msra.mxu0 0.0
      %345 = vmatprep.subr.mxu0 0.0
      %346 = vmatpush1.msra.mxu0 0.0
      %347 = vmatprep.subr.mxu0 0.0
      %348 = vmatpush1.msra.mxu0 0.0
      %349 = vmatprep.subr.mxu0 0.0
      %350 = vmatpush1.msra.mxu0 0.0
      %351 = vmatprep.subr.mxu0 0.0
      %352 = vmatpush1.msra.mxu0 0.0
      %353 = vmatprep.subr.mxu0 0.0
      %354 = vmatpush1.msra.mxu0 0.0
      %355 = vmatprep.subr.mxu0 0.0
      %356 = vmatpush1.msra.mxu0 0.0
      %357 = vmatprep.subr.mxu0 0.0
      %358 = vmatpush1.msra.mxu0 0.0
      %359 = vmatprep.subr.mxu0 0.0
      %360 = vmatpush1.msra.mxu0 0.0
      %361 = vmatprep.subr.mxu0 0.0
      %362 = vmatpush1.msra.mxu0 0.0
      %363 = vmatprep.subr.mxu0 0.0
      %364 = vmatpush1.msra.mxu0 0.0
      %365 = vmatprep.subr.mxu0 0.0
      %366 = vmatpush1.msra.mxu0 0.0
      %367 = vmatprep.subr.mxu0 0.0
      %368 = vmatpush1.msra.mxu0 0.0
      %369 = vmatprep.subr.mxu0 0.0
      %370 = vmatpush1.msra.mxu0 0.0
      %371 = vmatprep.subr.mxu0 0.0
      %372 = vmatpush1.msra.mxu0 0.0
      %373 = vmatprep.mubr.f32.mxu0 0.0
      %374 = vmatmul.mubr.f32.gmra.mrb[0].mxu0 %v304
      %v375 = vpop.f32.mrb[0].mxu0
      %v376 = vadd.f32 %v295, %v375
      %v377 = vpop.f32.mrb[0].mxu0
      %378 = vmatprep.mubr.f32.mxu0 0.0
      %379 = vmatmul.mubr.f32.gmra.mrb[0].mxu0 %v307
      %v380 = vpop.f32.mrb[0].mxu0
      %v381 = vadd.f32 %v300, %v380
      %v382 = vpop.f32.mrb[0].mxu0
      %383 = vdwg.mxu0
      %s384 = sadd.s32 %s194, 2
      %s385 = scalar_lea.vmem %s183, %s384
      %v386 = vld [vmem:[%s385] sm:$0xff]
      %v387 = vld [vmem:[%s385 + $0x8] sm:$0xff]
      %s388 = scalar_lea.vmem %s1, 144
      %v389 = vld [vmem:[%s388] sm:$0xff]
      %v390 = vld [vmem:[%s388 + $0x8] sm:$0xff]
      %v391 = vld [vmem:[%s388 + $0x10] sm:$0xff]
      %v392 = vld [vmem:[%s388 + $0x18] sm:$0xff]
      %v393 = vld [vmem:[%s388 + $0x20] sm:$0xff]
      %v394 = vld [vmem:[%s388 + $0x28] sm:$0xff]
      %v395 = vld [vmem:[%s388 + $0x30] sm:$0xff]
      %v396 = vld [vmem:[%s388 + $0x38] sm:$0xff]
      %v397 = vld [vmem:[%s388 + $0x40] sm:$0xff]
      %v399 = vsel %vm221, %v386, 0
      %v402 = vsel %vm221, %v387, 0
      %404 = vmatprep.subr.mxu0 0.0
      %405 = vmatpush1.msra.mxu0 %v389
      %406 = vmatprep.subr.mxu0 0.0
      %407 = vmatpush1.msra.mxu0 %v390
      %408 = vmatprep.subr.mxu0 0.0
      %409 = vmatpush1.msra.mxu0 %v391
      %410 = vmatprep.subr.mxu0 0.0
      %411 = vmatpush1.msra.mxu0 %v392
      %412 = vmatprep.subr.mxu0 0.0
      %413 = vmatpush1.msra.mxu0 %v393
      %414 = vmatprep.subr.mxu0 0.0
      %415 = vmatpush1.msra.mxu0 %v394
      %416 = vmatprep.subr.mxu0 0.0
      %417 = vmatpush1.msra.mxu0 %v395
      %418 = vmatprep.subr.mxu0 0.0
      %419 = vmatpush1.msra.mxu0 %v396
      %420 = vmatprep.subr.mxu0 0.0
      %421 = vmatpush1.msra.mxu0 %v397
      %422 = vmatprep.subr.mxu0 0.0
      %423 = vmatpush1.msra.mxu0 0.0
      %424 = vmatprep.subr.mxu0 0.0
      %425 = vmatpush1.msra.mxu0 0.0
      %426 = vmatprep.subr.mxu0 0.0
      %427 = vmatpush1.msra.mxu0 0.0
      %428 = vmatprep.subr.mxu0 0.0
      %429 = vmatpush1.msra.mxu0 0.0
      %430 = vmatprep.subr.mxu0 0.0
      %431 = vmatpush1.msra.mxu0 0.0
      %432 = vmatprep.subr.mxu0 0.0
      %433 = vmatpush1.msra.mxu0 0.0
      %434 = vmatprep.subr.mxu0 0.0
      %435 = vmatpush1.msra.mxu0 0.0
      %436 = vmatprep.subr.mxu0 0.0
      %437 = vmatpush1.msra.mxu0 0.0
      %438 = vmatprep.subr.mxu0 0.0
      %439 = vmatpush1.msra.mxu0 0.0
      %440 = vmatprep.subr.mxu0 0.0
      %441 = vmatpush1.msra.mxu0 0.0
      %442 = vmatprep.subr.mxu0 0.0
      %443 = vmatpush1.msra.mxu0 0.0
      %444 = vmatprep.subr.mxu0 0.0
      %445 = vmatpush1.msra.mxu0 0.0
      %446 = vmatprep.subr.mxu0 0.0
      %447 = vmatpush1.msra.mxu0 0.0
      %448 = vmatprep.subr.mxu0 0.0
      %449 = vmatpush1.msra.mxu0 0.0
      %450 = vmatprep.subr.mxu0 0.0
      %451 = vmatpush1.msra.mxu0 0.0
      %452 = vmatprep.subr.mxu0 0.0
      %453 = vmatpush1.msra.mxu0 0.0
      %454 = vmatprep.subr.mxu0 0.0
      %455 = vmatpush1.msra.mxu0 0.0
      %456 = vmatprep.subr.mxu0 0.0
      %457 = vmatpush1.msra.mxu0 0.0
      %458 = vmatprep.subr.mxu0 0.0
      %459 = vmatpush1.msra.mxu0 0.0
      %460 = vmatprep.subr.mxu0 0.0
      %461 = vmatpush1.msra.mxu0 0.0
      %462 = vmatprep.subr.mxu0 0.0
      %463 = vmatpush1.msra.mxu0 0.0
      %464 = vmatprep.subr.mxu0 0.0
      %465 = vmatpush1.msra.mxu0 0.0
      %466 = vmatprep.subr.mxu0 0.0
      %467 = vmatpush1.msra.mxu0 0.0
      %468 = vmatprep.mubr.f32.mxu0 0.0
      %469 = vmatmul.mubr.f32.gmra.mrb[0].mxu0 %v399
      %v470 = vpop.f32.mrb[0].mxu0
      %v471 = vadd.f32 0.0, %v470
      %v472 = vpop.f32.mrb[0].mxu0
      %473 = vmatprep.mubr.f32.mxu0 0.0
      %474 = vmatmul.mubr.f32.gmra.mrb[0].mxu0 %v402
      %v475 = vpop.f32.mrb[0].mxu0
      %v476 = vadd.f32 0.0, %v475
      %v477 = vpop.f32.mrb[0].mxu0
      %478 = vdwg.mxu0
      %v479 = vadd.f32 %v376, %v471
      %v480 = vadd.f32 %v381, %v476
      %v481 = vld [vmem:[%s2] sm:$0x1]
      %v483 = vlaneseq
      %v484 = vshrl.u32 %v483, 7
      %v485 = vsub.s32 0, %v484
      %v486 = vrot.slane %v481, %v485
      %v488 = vadd.f32 %v479, %v486
      %v489 = vadd.f32 %v480, %v486
      %v490 = vmax.f32 %v488, 0.0
      %v491 = vmax.f32 %v489, 0.0
      %492 = vst [vmem:[%s192] sm:$0xff] %v490
      %493 = vst [vmem:[%s192 + $0x8] sm:$0xff] %v491
      %s494 = smul.u32 2, %s19
      %p495 = scmp.lt.s32.totalorder %s18, 1
      %s496 = scalar_select %p495, %s18, 1
      %p497 = scmp.lt.s32.totalorder %s494, 1
      %s498 = scalar_select %p497, %s494, 1
      %s499 = smul.addr %s496, 2
      %s500 = sadd.s32 %s498, %s499
      %s501 = smul.addr %s500, 8
      %s502 = scalar_lea.vmem %s3, %s501
      // Predicated region
      $region33: #{conv2d_block_forward.1} parent=31 // pred_check
        %p503 = pneg %p114
      $region34: #{conv2d_block_forward.1} parent=31 // pred_check_branch
        %505 = sbr.rel (%p503) target = $region36
      $region35: #{conv2d_block_forward.1} parent=31 // pred_region
        %s506 = smul.u32 2, %s19
      $region36: #{conv2d_block_forward.1} parent=31 // pred_fallthru
        _
    $region32: #{conv2d_block_forward.1} parent=5 // pred_fallthru
      _
    %p507 = scmp.le.s32.totalorder 2, %s9
    // Predicated region
    $region37: #{conv2d_block_forward.1} parent=5 // pred_check
      %p508 = pneg %p507
    $region38: #{conv2d_block_forward.1} parent=5 // pred_check_branch
      %510 = sbr.rel (%p508) target = $region40
    $region39: #{conv2d_block_forward.1} parent=5 // pred_region
      %s511 = ssub.s32 %s9, 2
      // Predicated region
      $region41: #{conv2d_block_forward.1} parent=39 // pred_check
        %p512 = pneg %p120
      $region42: #{conv2d_block_forward.1} parent=39 // pred_check_branch
        %514 = sbr.rel (%p512) target = $region44
      $region43: #{conv2d_block_forward.1} parent=39 // pred_region
        %s515 = smul.u32 2, %s21
        %p516 = scmp.lt.s32.totalorder %s20, 1
        %s517 = scalar_select %p516, %s20, 1
        %p518 = scmp.lt.s32.totalorder %s515, 1
        %s519 = scalar_select %p518, %s515, 1
        %s520 = smul.addr %s517, 2
        %s521 = sadd.s32 %s519, %s520
        %s522 = smul.addr %s521, 8
        %s523 = scalar_lea.vmem %s3, %s522
      $region44: #{conv2d_block_forward.1} parent=39 // pred_fallthru
        _
    $region40: #{conv2d_block_forward.1} parent=5 // pred_fallthru
      _
  $region6: #{conv2d_block_forward.1} parent=0 // loop_footer
    %s13 = sadd.s32 1, %s9
  $region7: #{conv2d_block_forward.1} parent=0 // loop_footer_branch
    %8 = sbr.rel target = $region3
  $region8: #{conv2d_block_forward.1} parent=0 // loop_exit
    _

</llo_original>
